<compile_context>
chip_gen: v5e
topology: v5e:2x2
jax: 0.10.0
libtpu: 0.0.40
codegen_flags: <defaults>
</compile_context>

<pallas_src>
import functools

import jax
import jax.numpy as jnp
from jax.experimental import pallas as pl
from jax.experimental.pallas import tpu as pltpu


def _round_up(x, m):
    return ((x + m - 1) // m) * m


def _layernorm_kernel(x_ref, gain_ref, bias_ref, o_ref, *, eps, inv_n, inv_nm1):
    # One (block_rows, F) tile of independent rows; the full feature axis is
    # resident so the row reduction happens entirely in-kernel.
    x = x_ref[...].astype(jnp.float32)

    # torch.mean over the last axis.
    mean = jnp.sum(x, axis=-1, keepdims=True) * jnp.float32(inv_n)
    diff = x - mean

    # torch.var defaults to unbiased=True -> divide by (n - 1), matching the
    # original module (NOT nn.LayerNorm, which divides by n).
    var = jnp.sum(diff * diff, axis=-1, keepdims=True) * jnp.float32(inv_nm1)

    # One per-row rsqrt (EUP slot) instead of sqrt + per-element divide.
    inv_std = jax.lax.rsqrt(var + jnp.float32(eps))

    # gain/bias arrive pre-cast to f32 from the wrapper.
    o_ref[...] = (diff * inv_std * gain_ref[...] + bias_ref[...]).astype(o_ref.dtype)


def _tpu_vmem_bytes():
    """Per-core VMEM capacity; conservative (v7x-like) fallback on failure."""
    try:
        info = pltpu.get_tpu_info()
        return int(getattr(info, "vmem_capacity_bytes", 64 << 20))
    except Exception:
        return 64 << 20


def _choose_block_rows(B, F, dtype, vmem_bytes):
    """Pick a row-tile size: large (amortizes ~600-cycle grid-step overhead),
    sublane-aligned for the dtype, bounded by a per-tile VMEM budget, and (on
    multi-TensorCore parts only) split into enough grid steps to keep both
    cores busy with a double-buffered pipeline."""
    itemsize = jnp.dtype(dtype).itemsize
    # Kernel upcasts to f32; budget against the wider of storage/compute width.
    budget_itemsize = max(itemsize, 4)
    # Sublane packing: 8 rows/vreg for 32-bit, 16 for bf16, 32 for int8.
    align = max(8, 32 // itemsize)

    small_vmem = vmem_bytes < (100 << 20)  # v7x-like: 64 MiB per TensorCore
    if small_vmem:
        tile_budget_bytes = 3 << 20   # f32 intermediates are ~3-4x this on top
        target_rows = 512
        min_grid_steps = 4            # >= 2 pipelined steps per TensorCore
    else:
        tile_budget_bytes = 8 << 20   # 128 MiB VMEM (v5e/v6e): bigger tiles
        target_rows = 1024
        min_grid_steps = 1            # single TensorCore: never force a split

    max_rows_budget = (tile_budget_bytes // (F * budget_itemsize)) // align * align
    rows = max(align, min(target_rows, max_rows_budget))

    # Don't allocate a bigger tile than the batch needs.
    rows = min(rows, _round_up(B, align))

    if min_grid_steps > 1 and B > min_grid_steps * align:
        cap = _round_up(-(-B // min_grid_steps), align)
        rows = min(rows, max(align, cap))
    return rows


def layer_norm(x, gain, bias, *, eps=1e-5, block_rows=None):
    """LayerNorm forward. x: (B, F), gain/bias: (1, F)."""
    B, F = x.shape
    assert gain.shape == (1, F) and bias.shape == (1, F)
    assert F > 1, "unbiased variance (n-1) is undefined for F == 1"

    vmem_bytes = _tpu_vmem_bytes()
    if block_rows is None:
        block_rows = _choose_block_rows(B, F, x.dtype, vmem_bytes)

    # Tiny, constant-block-index params: pre-cast once on the host side so the
    # kernel does no per-step casts.
    gain32 = gain.astype(jnp.float32)
    bias32 = bias.astype(jnp.float32)

    kernel = functools.partial(
        _layernorm_kernel,
        eps=float(eps),
        inv_n=1.0 / F,
        inv_nm1=1.0 / (F - 1),
    )

    small_vmem = vmem_bytes < (100 << 20)
    vmem_limit = (48 << 20) if small_vmem else (96 << 20)

    # Ragged grid: no batch padding and no output slice.  Each row is
    # independent, so garbage rows read by the last partial block are simply
    # dropped by Pallas' masked output stores.
    grid = (pl.cdiv(B, block_rows),)

    out = pl.pallas_call(
        kernel,
        out_shape=jax.ShapeDtypeStruct((B, F), x.dtype),
        grid_spec=pltpu.PrefetchScalarGridSpec(
            num_scalar_prefetch=0,
            grid=grid,
            in_specs=[
                pl.BlockSpec((block_rows, F), lambda i: (i, 0)),  # x rows
                pl.BlockSpec((1, F), lambda i: (0, 0)),           # gain (bcast)
                pl.BlockSpec((1, F), lambda i: (0, 0)),           # bias (bcast)
            ],
            out_specs=pl.BlockSpec((block_rows, F), lambda i: (i, 0)),
        ),
        compiler_params=pltpu.CompilerParams(
            dimension_semantics=("parallel",),
            vmem_limit_bytes=vmem_limit,
        ),
    )(x, gain32, bias32)
    return out


def _reference(x, gain, bias, eps):
    # Pure-JAX reference with the same unbiased-variance semantics as torch.var.
    F = x.shape[-1]
    mean = jnp.mean(x, axis=-1, keepdims=True)
    var = jnp.sum((x - mean) ** 2, axis=-1, keepdims=True) / (F - 1)
    return (x - mean) / jnp.sqrt(var + eps) * gain + bias


if __name__ == "__main__":
    key = jax.random.PRNGKey(0)
    eps = 1e-5

    # Case 1: small, lane-dense 2-D input (batch, nb_features) with non-trivial
    # gain/bias (the module's Parameters after some training).
    B1, F1 = 8, 128
    k1, k2, k3, k4 = jax.random.split(key, 4)
    x1 = jax.random.normal(k1, (B1, F1), dtype=jnp.float32)
    gain1 = 1.0 + 0.1 * jax.random.normal(k3, (1, F1), dtype=jnp.float32)
    bias1 = 0.1 * jax.random.normal(k4, (1, F1), dtype=jnp.float32)

    out1 = jax.block_until_ready(layer_norm(x1, gain1, bias1, eps=eps))
    ref1 = _reference(x1, gain1, bias1, eps)
    assert jnp.allclose(out1, ref1, atol=1e-4, rtol=1e-4), "mismatch vs reference (case 1)"

    # Case 2: ragged batch + feature width that is not a multiple of 128
    # (exercises the cdiv-grid masked-store path with NO host-side pad/slice).
    B2, F2 = 10, 96
    x2 = jax.random.normal(k2, (B2, F2), dtype=jnp.float32)
    gain2 = jnp.ones((1, F2), dtype=jnp.float32)   # nn.Parameter(torch.ones)
    bias2 = jnp.zeros((1, F2), dtype=jnp.float32)  # nn.Parameter(torch.zeros)

    out2 = jax.block_until_ready(layer_norm(x2, gain2, bias2, eps=eps))
    ref2 = _reference(x2, gain2, bias2, eps)
    assert jnp.allclose(out2, ref2, atol=1e-4, rtol=1e-4), "mismatch vs reference (case 2)"

    print("KERNEL_OK")
</pallas_src>

<mosaic_0001>
module attributes {stable_mosaic.version = 11 : i64} {
  func.func @_layernorm_kernel(%arg0: i32, %arg1: memref<8x128xf32, #tpu.memory_space<vmem>>, %arg2: memref<1x128xf32, #tpu.memory_space<vmem>>, %arg3: memref<1x128xf32, #tpu.memory_space<vmem>>, %arg4: memref<8x128xf32, #tpu.memory_space<vmem>>) attributes {dimension_semantics = [#tpu.dimension_semantics<parallel>], iteration_bounds = array<i64: 1>, scalar_prefetch = 0 : i64, scratch_operands = 0 : i64, tpu.core_type = #tpu.core_type<tc>, window_params = [{transform_indices = @transform_0, window_bounds = array<i64: 8, 128>}, {pipeline_mode = #tpu.pipeline_mode<synchronous>, transform_indices = @transform_1, window_bounds = array<i64: 1, 128>}, {pipeline_mode = #tpu.pipeline_mode<synchronous>, transform_indices = @transform_2, window_bounds = array<i64: 1, 128>}, {transform_indices = @transform_3, window_bounds = array<i64: 8, 128>}]} {
    %c0 = arith.constant 0 : index
    %c0_0 = arith.constant 0 : index
    %0 = vector.load %arg1[%c0, %c0_0] : memref<8x128xf32, #tpu.memory_space<vmem>>, vector<8x128xf32>
    %cst = arith.constant dense<0.000000e+00> : vector<8xf32>
    %1 = vector.multi_reduction <add>, %0, %cst [1] : vector<8x128xf32> to vector<8xf32>
    %2 = vector.shape_cast %1 : vector<8xf32> to vector<8x1xf32>
    %cst_1 = arith.constant 7.812500e-03 : f32
    %3 = vector.broadcast %cst_1 : f32 to vector<8x1xf32>
    %4 = arith.mulf %2, %3 : vector<8x1xf32>
    %5 = vector.broadcast %4 : vector<8x1xf32> to vector<8x128xf32>
    %6 = arith.subf %0, %5 : vector<8x128xf32>
    %7 = arith.mulf %6, %6 : vector<8x128xf32>
    %cst_2 = arith.constant dense<0.000000e+00> : vector<8xf32>
    %8 = vector.multi_reduction <add>, %7, %cst_2 [1] : vector<8x128xf32> to vector<8xf32>
    %9 = vector.shape_cast %8 : vector<8xf32> to vector<8x1xf32>
    %cst_3 = arith.constant 0.00787401571 : f32
    %10 = vector.broadcast %cst_3 : f32 to vector<8x1xf32>
    %11 = arith.mulf %9, %10 : vector<8x1xf32>
    %cst_4 = arith.constant 9.99999974E-6 : f32
    %12 = vector.broadcast %cst_4 : f32 to vector<8x1xf32>
    %13 = arith.addf %11, %12 : vector<8x1xf32>
    %14 = math.rsqrt %13 : vector<8x1xf32>
    %15 = vector.broadcast %14 : vector<8x1xf32> to vector<8x128xf32>
    %16 = arith.mulf %6, %15 : vector<8x128xf32>
    %c0_5 = arith.constant 0 : index
    %c0_6 = arith.constant 0 : index
    %17 = vector.load %arg2[%c0_5, %c0_6] : memref<1x128xf32, #tpu.memory_space<vmem>>, vector<1x128xf32>
    %18 = vector.broadcast %17 : vector<1x128xf32> to vector<8x128xf32>
    %19 = arith.mulf %16, %18 : vector<8x128xf32>
    %c0_7 = arith.constant 0 : index
    %c0_8 = arith.constant 0 : index
    %20 = vector.load %arg3[%c0_7, %c0_8] : memref<1x128xf32, #tpu.memory_space<vmem>>, vector<1x128xf32>
    %21 = vector.broadcast %20 : vector<1x128xf32> to vector<8x128xf32>
    %22 = arith.addf %19, %21 : vector<8x128xf32>
    %c0_9 = arith.constant 0 : index
    %c0_10 = arith.constant 0 : index
    %23 = vector.load %arg4[%c0_9, %c0_10] : memref<8x128xf32, #tpu.memory_space<vmem>>, vector<8x128xf32>
    tpu.vector_store %arg4[%c0_9, %c0_10], %22 {strides = array<i32>} : memref<8x128xf32, #tpu.memory_space<vmem>>, vector<8x128xf32>,
    return
  }
  func.func @transform_0(%arg0: i32) -> (i32, i32) {
    %c0_i32 = arith.constant 0 : i32
    %c0_i32_0 = arith.constant 0 : i32
    return %arg0, %c0_i32 : i32, i32
  }
  func.func @transform_1(%arg0: i32) -> (i32, i32) {
    %c0_i32 = arith.constant 0 : i32
    %c0_i32_0 = arith.constant 0 : i32
    %c0_i32_1 = arith.constant 0 : i32
    return %c0_i32, %c0_i32_0 : i32, i32
  }
  func.func @transform_2(%arg0: i32) -> (i32, i32) {
    %c0_i32 = arith.constant 0 : i32
    %c0_i32_0 = arith.constant 0 : i32
    %c0_i32_1 = arith.constant 0 : i32
    return %c0_i32, %c0_i32_0 : i32, i32
  }
  func.func @transform_3(%arg0: i32) -> (i32, i32) {
    %c0_i32 = arith.constant 0 : i32
    %c0_i32_0 = arith.constant 0 : i32
    return %arg0, %c0_i32 : i32, i32
  }
}

</mosaic_0001>

<llo_original>
// kernel: tpu_custom_call.1
$region0: #{tpu_custom_call.1}
  #allocation0 [shape = 'u32[]', space=smem, size = 0x4, offset = 0x4, fixed_abs, tag = 'smem constant byte address 0x4 - core index']
  #allocation1 [shape = 'u32[72,128]{1,0:T(1,128)}', space=vmem, size = 0x9000, scoped, tag = 'internal scratch']
  %s0 = inlined_call_operand.hbm [shape: f32[8,128], index: 0, kind: input, shape index: {}]
  %s1 = inlined_call_operand.hbm [shape: f32[1,128], index: 1, kind: input, shape index: {}]
  %s2 = inlined_call_operand.vmem [shape: f32[1,128], index: 2, kind: input, shape index: {}]
  %s3 = inlined_call_operand.hbm [shape: f32[8,128], index: 3, kind: output, shape index: {}]
  %s4 = sld [smem:[#allocation0]]
  $region30: #{tpu_custom_call.1} parent=0
    _
  %s6 = ssub.s32 1, %s4
  %s7 = scalar_select 0, %s6, %s4
  $region1: #{tpu_custom_call.1} parent=0
    #allocation2 [shape = 'u8[4096]{0}', space=vmem, size = 0x1000, scoped, tag = 'input window, operand 0, single buffered']
    #allocation3 [shape = 's32[1]{0}', space=sflag, size = 0x4, scoped, tag = 'scoped memory for tpu_custom_call.1']
    #allocation4 [shape = 's32[1]{0}', space=sflag, size = 0x4, scoped, tag = 'scoped memory for tpu_custom_call.1']
    #allocation5 [shape = 'u8[512]{0}', space=vmem, size = 0x400, scoped, tag = 'input window, operand 1, single buffered']
    #allocation6 [shape = 's32[1]{0}', space=sflag, size = 0x4, scoped, tag = 'scoped memory for tpu_custom_call.1']
    #allocation7 [shape = 'u8[4096]{0}', space=vmem, size = 0x1000, scoped, tag = 'output window, operand 0, single buffered']
    %8 = vsyncpa [#allocation3], 0
    %9 = vsyncpa [#allocation6], 0
    %10 = vsyncpa [#allocation4], 0
    // Predicated region
    $region2: #{tpu_custom_call.1} parent=1 // pred_check
      _
    $region3: #{tpu_custom_call.1} parent=1 // pred_check_branch
      %12 = sbr.rel (0) target = $region5
    $region4: #{tpu_custom_call.1} parent=1 // pred_region
      %14 = vsyncadd [#allocation3], 0
      %s16 = sshll.u32 %s0, 4
      %s17 = int_to_ptr.hbm [resolvable:$true] %s16
      %s18 = sshll.u32 [#allocation2], 4
      %s19 = int_to_ptr.vmem [resolvable:$true] %s18
      %21 = dma.hbm_to_vmem [thread:$0]  %s17, 128, %s19, [#allocation3]
    $region5: #{tpu_custom_call.1} parent=1 // pred_fallthru
      _
    // Predicated region
    $region6: #{tpu_custom_call.1} parent=1 // pred_check
      _
    $region7: #{tpu_custom_call.1} parent=1 // pred_check_branch
      %23 = sbr.rel (0) target = $region9
    $region8: #{tpu_custom_call.1} parent=1 // pred_region
      %25 = vsyncadd [#allocation6], 0
      %s27 = sshll.u32 %s1, 4
      %s28 = int_to_ptr.hbm [resolvable:$true] %s27
      %s29 = sshll.u32 [#allocation5], 4
      %s30 = int_to_ptr.vmem [resolvable:$true] %s29
      %32 = dma.hbm_to_vmem [thread:$0]  %s28, 16, %s30, [#allocation6]
    $region9: #{tpu_custom_call.1} parent=1 // pred_fallthru
      _
    // Predicated region
    $region10: #{tpu_custom_call.1} parent=1 // pred_check
      _
    $region11: #{tpu_custom_call.1} parent=1 // pred_check_branch
      %34 = sbr.rel (0) target = $region13
    $region12: #{tpu_custom_call.1} parent=1 // pred_region
      _
    $region13: #{tpu_custom_call.1} parent=1 // pred_fallthru
      _
    // Predicated region
    $region14: #{tpu_custom_call.1} parent=1 // pred_check
      _
    $region15: #{tpu_custom_call.1} parent=1 // pred_check_branch
      %36 = sbr.rel (0) target = $region17
    $region16: #{tpu_custom_call.1} parent=1 // pred_region
      %38 = dma.done [#allocation3], 128
    $region17: #{tpu_custom_call.1} parent=1 // pred_fallthru
      _
    // Predicated region
    $region18: #{tpu_custom_call.1} parent=1 // pred_check
      _
    $region19: #{tpu_custom_call.1} parent=1 // pred_check_branch
      %40 = sbr.rel (0) target = $region21
    $region20: #{tpu_custom_call.1} parent=1 // pred_region
      %42 = dma.done [#allocation6], 16
    $region21: #{tpu_custom_call.1} parent=1 // pred_fallthru
      _
    %v43 = vld [vmem:[#allocation2] sm:$0xff]
    %44 = vadd.xlane.f32.xlu0 %v43
    %v45 = vpop.xlane.xlu0 %44
    %v46 = vmul.f32 %v45, 0.0078125
    %v47 = vsub.f32 %v43, %v46
    %v48 = vmul.f32 %v47, %v47
    %49 = vadd.xlane.f32.xlu0 %v48
    %v50 = vpop.xlane.xlu0 %49
    %v51 = vmul.f32 %v50, 0.007874016
    %v52 = vadd.f32 %v51, 1e-05
    %v53 = vrsqrt.pop %v52
    %v54 = vmul.f32 %v53, %v52
    %v55 = vmul.f32 %v54, %v53
    %v56 = vmul.f32 0.5, %v55
    %v57 = vsub.f32 1.5, %v56
    %v58 = vmul.f32 %v53, %v57
    %vm59 = vweird.f32 %v52
    %vm60 = vweird.f32 %v53
    %vm61 = vmor %vm59, %vm60
    %v62 = vsel %vm61, %v53, %v58
    %v63 = vmul.f32 %v47, %v62
    %v64 = vld [vmem:[#allocation5] sm:$0x1]
    %v66 = vperm.slane %v64, 0
    %v68 = vmul.f32 %v63, %v66
    %v69 = vld [vmem:[%s2] sm:$0x1]
    %v71 = vperm.slane %v69, 0
    %v73 = vadd.f32 %v68, %v71
    %74 = vst [vmem:[#allocation7] sm:$0xff] %v73
    // Predicated region
    $region22: #{tpu_custom_call.1} parent=1 // pred_check
      _
    $region23: #{tpu_custom_call.1} parent=1 // pred_check_branch
      %76 = sbr.rel (0) target = $region25
    $region24: #{tpu_custom_call.1} parent=1 // pred_region
      %78 = vsyncadd [#allocation4], 0
      %s80 = sshll.u32 [#allocation7], 4
      %s81 = int_to_ptr.vmem [resolvable:$true] %s80
      %s82 = sshll.u32 %s3, 4
      %s83 = int_to_ptr.hbm [resolvable:$true] %s82
      %85 = dma.vmem_to_hbm [thread:$0]  %s81, 128, %s83, [#allocation4]
    $region25: #{tpu_custom_call.1} parent=1 // pred_fallthru
      _
    // Predicated region
    $region26: #{tpu_custom_call.1} parent=1 // pred_check
      _
    $region27: #{tpu_custom_call.1} parent=1 // pred_check_branch
      %87 = sbr.rel (0) target = $region29
    $region28: #{tpu_custom_call.1} parent=1 // pred_region
      %89 = dma.done [#allocation4], 128
    $region29: #{tpu_custom_call.1} parent=1 // pred_fallthru
      _
    %90 = vsyncpa [#allocation3], 1
    %91 = vsyncpa [#allocation6], 1
    %92 = vsyncpa [#allocation4], 1

</llo_original>
